<compile_context>
chip_gen: v7x
topology: tpu7x:2x2x1
jax: 0.10.0
libtpu: 0.0.40
codegen_flags: <defaults>
</compile_context>

<pallas_src>
import functools

import jax
import jax.numpy as jnp
from jax.experimental import pallas as pl
from jax.experimental.pallas import tpu as pltpu


def _agg_kernel(a_ref, g_ref, b_ref, out_ref, *, activation):
    """One GCN aggregation row slab: out = act(A_slab @ G + b).

    a_ref: (TM, N) bf16 row slab of the normalized adjacency (streamed).
    g_ref: (N, F) bf16, G = X @ W precomputed in the wrapper (resident).
    b_ref: (1, F) f32 bias.  All elementwise math is f32.
    """
    h = jnp.dot(a_ref[...], g_ref[...], preferred_element_type=jnp.float32)
    h = h + b_ref[...]
    if activation == "relu":
        out_ref[...] = jnp.maximum(h, 0.0)
    else:  # log_softmax over dim=1 (features / classes)
        m = jnp.max(h, axis=1, keepdims=True)
        z = h - m
        lse = jnp.log(jnp.sum(jnp.exp(z), axis=1, keepdims=True))
        out_ref[...] = z - lse


def _aggregate(a_bf16, g_bf16, bias, *, activation, tm):
    """Row-tiled pallas_call computing act(A_hat @ G + b)."""
    n_pad = a_bf16.shape[0]
    f = g_bf16.shape[1]
    grid = (n_pad // tm,)

    flops = 2 * n_pad * n_pad * f
    transcendentals = n_pad * f if activation == "log_softmax" else 0
    bytes_accessed = (n_pad * n_pad * 2      # streamed bf16 A slabs
                      + n_pad * f * 2        # resident bf16 G
                      + n_pad * f * 4)       # f32 output

    return pl.pallas_call(
        functools.partial(_agg_kernel, activation=activation),
        out_shape=jax.ShapeDtypeStruct((n_pad, f), jnp.float32),
        grid=grid,
        in_specs=[
            pl.BlockSpec((tm, n_pad), lambda i: (i, 0)),   # A row slab (pipelined)
            pl.BlockSpec((n_pad, f), lambda i: (0, 0)),    # G: small, resident
            pl.BlockSpec((1, f), lambda i: (0, 0)),        # bias
        ],
        out_specs=pl.BlockSpec((tm, f), lambda i: (i, 0)),
        compiler_params=pltpu.CompilerParams(
            dimension_semantics=("parallel",)),
        cost_estimate=pl.CostEstimate(
            flops=flops,
            transcendentals=transcendentals,
            bytes_accessed=bytes_accessed),
    )(a_bf16, g_bf16, bias)


def _round_up(x, m):
    return (x + m - 1) // m * m


def _pick_row_tile(n, vmem_budget_bytes=24 << 20):
    """Largest row-slab height s.t. 2 double-buffered bf16 (TM, N) slabs fit."""
    if n <= 512:
        return _round_up(n, 8)
    tm = 512
    while tm > 8 and 2 * tm * _round_up(n, tm) * 2 > vmem_budget_bytes:
        tm //= 2
    return tm


def build_normalized_adjacency(edge_index, num_nodes, num_nodes_padded):
    """Dense D^-1/2 (A + I) D^-1/2, matching torch_geometric GCNConv gcn_norm.

    Padded rows/columns (>= num_nodes) stay exactly zero.
    """
    row, col = edge_index[0], edge_index[1]
    loops = jnp.arange(num_nodes, dtype=edge_index.dtype)
    row = jnp.concatenate([row, loops])
    col = jnp.concatenate([col, loops])
    w = jnp.ones_like(row, dtype=jnp.float32)

    deg = jnp.zeros((num_nodes_padded,), jnp.float32).at[col].add(w)
    dinv = jnp.where(deg > 0, jax.lax.rsqrt(deg), 0.0)
    norm = dinv[row] * dinv[col]

    # aggregation is into the target node: out[col] += norm * x[row]
    a_hat = (jnp.zeros((num_nodes_padded, num_nodes_padded), jnp.float32)
             .at[col, row].add(norm))
    return a_hat


def gcn_forward(x, edge_index, w1, b1, w2, b2):
    n = x.shape[0]
    tm = _pick_row_tile(n)
    n_pad = _round_up(n, tm)

    # Graph glue (plain JAX): normalized adjacency in bf16 for streaming.
    a_hat = build_normalized_adjacency(edge_index, n, n_pad)
    a_bf16 = a_hat.astype(jnp.bfloat16)

    x_pad = jnp.zeros((n_pad, x.shape[1]), x.dtype).at[:n].set(x)

    # Layer 1: H = relu(A_hat @ (X W1) + b1); X W1 is a tiny [N, hidden] matmul.
    g1 = jnp.dot(x_pad, w1).astype(jnp.bfloat16)
    h = _aggregate(a_bf16, g1, b1, activation="relu", tm=tm)

    # Layer 2: out = log_softmax(A_hat @ (H W2) + b2, dim=1).
    g2 = jnp.dot(h, w2).astype(jnp.bfloat16)
    out_pad = _aggregate(a_bf16, g2, b2, activation="log_softmax", tm=tm)
    return out_pad[:n]


def glorot(key, shape):
    fan_in, fan_out = shape
    limit = jnp.sqrt(6.0 / (fan_in + fan_out))
    return jax.random.uniform(key, shape, jnp.float32, -limit, limit)


if __name__ == "__main__":
    num_nodes = 8
    in_channels = 4
    hidden_channels = 32
    out_channels = 8
    num_edges = 16

    key = jax.random.PRNGKey(0)
    kx, ke, kw1, kw2 = jax.random.split(key, 4)

    # node features [N, F_in]
    x = jax.random.normal(kx, (num_nodes, in_channels), jnp.float32)

    # random directed edge list [2, E]
    edge_index = jax.random.randint(ke, (2, num_edges), 0, num_nodes, jnp.int32)

    # deterministic parameter init (GCNConv: glorot weight, zero bias)
    w1 = glorot(kw1, (in_channels, hidden_channels))
    b1 = jnp.zeros((1, hidden_channels), jnp.float32)
    w2 = glorot(kw2, (hidden_channels, out_channels))
    b2 = jnp.zeros((1, out_channels), jnp.float32)

    out = jax.jit(gcn_forward)(x, edge_index, w1, b1, w2, b2)
    jax.block_until_ready(out)

    # pure-JAX f32 reference for a sanity check
    a_ref = build_normalized_adjacency(edge_index, num_nodes, num_nodes)
    h_ref = jnp.maximum(a_ref @ (x @ w1) + b1, 0.0)
    ref = jax.nn.log_softmax(a_ref @ (h_ref @ w2) + b2, axis=1)

    row_sums = jnp.sum(jnp.exp(out), axis=1)
    assert out.shape == (num_nodes, out_channels)
    assert bool(jnp.all(jnp.abs(row_sums - 1.0) < 1e-4))
    # generous tolerance: A_hat and the right-hand factors are bf16
    assert bool(jnp.max(jnp.abs(out - ref)) < 0.25)

    print("KERNEL_OK")
</pallas_src>

<mosaic_0001>
module attributes {stable_mosaic.version = 11 : i64} {
  func.func @_agg_kernel(%arg0: i32, %arg1: memref<8x8xbf16, #tpu.memory_space<vmem>>, %arg2: memref<8x32xbf16, #tpu.memory_space<vmem>>, %arg3: memref<1x32xf32, #tpu.memory_space<vmem>>, %arg4: memref<8x32xf32, #tpu.memory_space<vmem>>) attributes {dimension_semantics = [#tpu.dimension_semantics<parallel>], iteration_bounds = array<i64: 1>, scalar_prefetch = 0 : i64, scratch_operands = 0 : i64, tpu.core_type = #tpu.core_type<tc>, window_params = [{transform_indices = @transform_0, window_bounds = array<i64: 8, 8>}, {pipeline_mode = #tpu.pipeline_mode<synchronous>, transform_indices = @transform_1, window_bounds = array<i64: 8, 32>}, {pipeline_mode = #tpu.pipeline_mode<synchronous>, transform_indices = @transform_2, window_bounds = array<i64: 1, 32>}, {transform_indices = @transform_3, window_bounds = array<i64: 8, 32>}]} {
    %c0 = arith.constant 0 : index
    %c0_0 = arith.constant 0 : index
    %0 = vector.load %arg1[%c0, %c0_0] : memref<8x8xbf16, #tpu.memory_space<vmem>>, vector<8x8xbf16>
    %c0_1 = arith.constant 0 : index
    %c0_2 = arith.constant 0 : index
    %1 = vector.load %arg2[%c0_1, %c0_2] : memref<8x32xbf16, #tpu.memory_space<vmem>>, vector<8x32xbf16>
    %cst = arith.constant dense<0.000000e+00> : vector<8x32xf32>
    %2 = tpu.matmul %0, %1, %cst {dimension_numbers = #tpu.dot_dimension_numbers<[1], [0], [0], [1], [0, 0, 1, 1], [], []>} : vector<8x8xbf16>, vector<8x32xbf16>, vector<8x32xf32> -> vector<8x32xf32>
    %c0_3 = arith.constant 0 : index
    %c0_4 = arith.constant 0 : index
    %3 = vector.load %arg3[%c0_3, %c0_4] : memref<1x32xf32, #tpu.memory_space<vmem>>, vector<1x32xf32>
    %4 = vector.broadcast %3 : vector<1x32xf32> to vector<8x32xf32>
    %5 = arith.addf %2, %4 : vector<8x32xf32>
    %cst_5 = arith.constant 0.000000e+00 : f32
    %6 = vector.broadcast %cst_5 : f32 to vector<8x32xf32>
    %7 = arith.maximumf %5, %6 : vector<8x32xf32>
    %c0_6 = arith.constant 0 : index
    %c0_7 = arith.constant 0 : index
    %8 = vector.load %arg4[%c0_6, %c0_7] : memref<8x32xf32, #tpu.memory_space<vmem>>, vector<8x32xf32>
    tpu.vector_store %arg4[%c0_6, %c0_7], %7 {strides = array<i32>} : memref<8x32xf32, #tpu.memory_space<vmem>>, vector<8x32xf32>,
    return
  }
  func.func @transform_0(%arg0: i32) -> (i32, i32) {
    %c0_i32 = arith.constant 0 : i32
    %c0_i32_0 = arith.constant 0 : i32
    return %arg0, %c0_i32 : i32, i32
  }
  func.func @transform_1(%arg0: i32) -> (i32, i32) {
    %c0_i32 = arith.constant 0 : i32
    %c0_i32_0 = arith.constant 0 : i32
    %c0_i32_1 = arith.constant 0 : i32
    return %c0_i32, %c0_i32_0 : i32, i32
  }
  func.func @transform_2(%arg0: i32) -> (i32, i32) {
    %c0_i32 = arith.constant 0 : i32
    %c0_i32_0 = arith.constant 0 : i32
    %c0_i32_1 = arith.constant 0 : i32
    return %c0_i32, %c0_i32_0 : i32, i32
  }
  func.func @transform_3(%arg0: i32) -> (i32, i32) {
    %c0_i32 = arith.constant 0 : i32
    %c0_i32_0 = arith.constant 0 : i32
    return %arg0, %c0_i32 : i32, i32
  }
}

module attributes {stable_mosaic.version = 11 : i64} {
  func.func @_agg_kernel(%arg0: i32, %arg1: memref<8x8xbf16, #tpu.memory_space<vmem>>, %arg2: memref<8x8xbf16, #tpu.memory_space<vmem>>, %arg3: memref<1x8xf32, #tpu.memory_space<vmem>>, %arg4: memref<8x8xf32, #tpu.memory_space<vmem>>) attributes {dimension_semantics = [#tpu.dimension_semantics<parallel>], iteration_bounds = array<i64: 1>, scalar_prefetch = 0 : i64, scratch_operands = 0 : i64, tpu.core_type = #tpu.core_type<tc>, window_params = [{transform_indices = @transform_0, window_bounds = array<i64: 8, 8>}, {pipeline_mode = #tpu.pipeline_mode<synchronous>, transform_indices = @transform_1, window_bounds = array<i64: 8, 8>}, {pipeline_mode = #tpu.pipeline_mode<synchronous>, transform_indices = @transform_2, window_bounds = array<i64: 1, 8>}, {transform_indices = @transform_3, window_bounds = array<i64: 8, 8>}]} {
    %c0 = arith.constant 0 : index
    %c0_0 = arith.constant 0 : index
    %0 = vector.load %arg1[%c0, %c0_0] : memref<8x8xbf16, #tpu.memory_space<vmem>>, vector<8x8xbf16>
    %c0_1 = arith.constant 0 : index
    %c0_2 = arith.constant 0 : index
    %1 = vector.load %arg2[%c0_1, %c0_2] : memref<8x8xbf16, #tpu.memory_space<vmem>>, vector<8x8xbf16>
    %cst = arith.constant dense<0.000000e+00> : vector<8x8xf32>
    %2 = tpu.matmul %0, %1, %cst {dimension_numbers = #tpu.dot_dimension_numbers<[1], [0], [0], [1], [0, 0, 1, 1], [], []>} : vector<8x8xbf16>, vector<8x8xbf16>, vector<8x8xf32> -> vector<8x8xf32>
    %c0_3 = arith.constant 0 : index
    %c0_4 = arith.constant 0 : index
    %3 = vector.load %arg3[%c0_3, %c0_4] : memref<1x8xf32, #tpu.memory_space<vmem>>, vector<1x8xf32>
    %4 = vector.broadcast %3 : vector<1x8xf32> to vector<8x8xf32>
    %5 = arith.addf %2, %4 : vector<8x8xf32>
    %cst_5 = arith.constant dense<0xFF800000> : vector<8xf32>
    %6 = vector.multi_reduction <maximumf>, %5, %cst_5 [1] : vector<8x8xf32> to vector<8xf32>
    %7 = vector.shape_cast %6 : vector<8xf32> to vector<8x1xf32>
    %8 = vector.broadcast %7 : vector<8x1xf32> to vector<8x8xf32>
    %9 = arith.subf %5, %8 : vector<8x8xf32>
    %10 = math.exp %9 : vector<8x8xf32>
    %cst_6 = arith.constant dense<0.000000e+00> : vector<8xf32>
    %11 = vector.multi_reduction <add>, %10, %cst_6 [1] : vector<8x8xf32> to vector<8xf32>
    %12 = vector.shape_cast %11 : vector<8xf32> to vector<8x1xf32>
    %13 = math.log %12 : vector<8x1xf32>
    %14 = vector.broadcast %13 : vector<8x1xf32> to vector<8x8xf32>
    %15 = arith.subf %9, %14 : vector<8x8xf32>
    %c0_7 = arith.constant 0 : index
    %c0_8 = arith.constant 0 : index
    %16 = vector.load %arg4[%c0_7, %c0_8] : memref<8x8xf32, #tpu.memory_space<vmem>>, vector<8x8xf32>
    tpu.vector_store %arg4[%c0_7, %c0_8], %15 {strides = array<i32>} : memref<8x8xf32, #tpu.memory_space<vmem>>, vector<8x8xf32>,
    return
  }
  func.func @transform_0(%arg0: i32) -> (i32, i32) {
    %c0_i32 = arith.constant 0 : i32
    %c0_i32_0 = arith.constant 0 : i32
    return %arg0, %c0_i32 : i32, i32
  }
  func.func @transform_1(%arg0: i32) -> (i32, i32) {
    %c0_i32 = arith.constant 0 : i32
    %c0_i32_0 = arith.constant 0 : i32
    %c0_i32_1 = arith.constant 0 : i32
    return %c0_i32, %c0_i32_0 : i32, i32
  }
  func.func @transform_2(%arg0: i32) -> (i32, i32) {
    %c0_i32 = arith.constant 0 : i32
    %c0_i32_0 = arith.constant 0 : i32
    %c0_i32_1 = arith.constant 0 : i32
    return %c0_i32, %c0_i32_0 : i32, i32
  }
  func.func @transform_3(%arg0: i32) -> (i32, i32) {
    %c0_i32 = arith.constant 0 : i32
    %c0_i32_0 = arith.constant 0 : i32
    return %arg0, %c0_i32 : i32, i32
  }
}

</mosaic_0001>

<llo_original>
// kernel: mul.1
$region0: #{mul.1}
  #allocation0 [shape = 's32[1]{0}', space=sflag, size = 0x4, scoped, tag = 'scoped memory for mul.1']
  %s0 = inlined_call_operand.vmem [shape: f32[24], index: 0, kind: input, shape index: {}]
  %s1 = inlined_call_operand.vmem [shape: f32[24], index: 1, kind: input, shape index: {}]
  %s2 = inlined_call_operand.vmem [shape: f32[24], index: 2, kind: output, shape index: {}]
  %v3 = vld [vmem:[%s0] sm:$0x1]
  %v4 = vld [vmem:[%s1] sm:$0x1]
  %5 = xla_tuple %v3, %v4
  %6 = xla_tuple %5
  %v7 = vmul.f32 %v3, %v4
  %8 = xla_tuple %v7
  %9 = vst [vmem:[%s2] sm:$0x1] %v7

// kernel: gcn_forward.3
$region0: #{gcn_forward.3}
  #allocation0 [shape = 'u32[]', space=smem, size = 0x4, offset = 0x4, fixed_abs, tag = 'smem constant byte address 0x4 - core index']
  #allocation1 [shape = 'u32[144,128]{1,0:T(1,128)}', space=vmem, size = 0x12000, scoped, tag = 'internal scratch']
  %s0 = inlined_call_operand.vmem [shape: bf16[8,8], index: 0, kind: input, shape index: {}]
  %s1 = inlined_call_operand.vmem [shape: bf16[8,8], index: 1, kind: input, shape index: {}]
  %s2 = inlined_call_operand.vmem [shape: f32[1,8], index: 2, kind: input, shape index: {}]
  %s3 = inlined_call_operand.hbm [shape: f32[8,8], index: 3, kind: output, shape index: {}]
  %s4 = sld [smem:[#allocation0]]
  $region22: #{gcn_forward.3} parent=0
    _
  %s6 = ssub.s32 1, %s4
  %s7 = scalar_select 0, %s6, %s4
  $region1: #{gcn_forward.3} parent=0
    #allocation2 [shape = 'u8[4096]{0}', space=vmem, size = 0x1000, scoped, tag = 'output window, operand 0, single buffered']
    #allocation3 [shape = 's32[1]{0}', space=sflag, size = 0x4, scoped, tag = 'scoped memory for gcn_forward.3']
    %8 = vsyncpa [#allocation3], 0
    // Predicated region
    $region2: #{gcn_forward.3} parent=1 // pred_check
      _
    $region3: #{gcn_forward.3} parent=1 // pred_check_branch
      %10 = sbr.rel (0) target = $region5
    $region4: #{gcn_forward.3} parent=1 // pred_region
      _
    $region5: #{gcn_forward.3} parent=1 // pred_fallthru
      _
    // Predicated region
    $region6: #{gcn_forward.3} parent=1 // pred_check
      _
    $region7: #{gcn_forward.3} parent=1 // pred_check_branch
      %12 = sbr.rel (0) target = $region9
    $region8: #{gcn_forward.3} parent=1 // pred_region
      _
    $region9: #{gcn_forward.3} parent=1 // pred_fallthru
      _
    // Predicated region
    $region10: #{gcn_forward.3} parent=1 // pred_check
      _
    $region11: #{gcn_forward.3} parent=1 // pred_check_branch
      %14 = sbr.rel (0) target = $region13
    $region12: #{gcn_forward.3} parent=1 // pred_region
      _
    $region13: #{gcn_forward.3} parent=1 // pred_fallthru
      _
    %v16 = vld [vmem:[%s0] sm:$0xf]
    %v17 = vld [vmem:[%s1] sm:$0xf]
    %v18 = vld [vmem:[%s2] sm:$0x1]
    %v20 = vlaneseq
    %v21 = vshrl.u32 %v20, 7
    %v22 = vsub.s32 0, %v21
    %v23 = vrot.slane %v18, %v22
    %vm25 = vcmask 64512
    %v27 = vsel %vm25, %v16, 0
    %vm29 = vcmask 1043456
    %v31 = vsel %vm29, %v17, 0
    %33 = vmatprep.subr.bf16.mxu0 0
    %34 = vmatpush1.bf16.msra.mxu0 %v31
    %35 = vmatprep.subr.bf16.mxu0 0
    %36 = vmatpush1.bf16.msra.mxu0 0
    %37 = vmatprep.subr.bf16.mxu0 0
    %38 = vmatpush1.bf16.msra.mxu0 0
    %39 = vmatprep.subr.bf16.mxu0 0
    %40 = vmatpush1.bf16.msra.mxu0 0
    %41 = vmatprep.subr.bf16.mxu0 0
    %42 = vmatpush1.bf16.msra.mxu0 0
    %43 = vmatprep.subr.bf16.mxu0 0
    %44 = vmatpush1.bf16.msra.mxu0 0
    %45 = vmatprep.subr.bf16.mxu0 0
    %46 = vmatpush1.bf16.msra.mxu0 0
    %47 = vmatprep.subr.bf16.mxu0 0
    %48 = vmatpush1.bf16.msra.mxu0 0
    %49 = vmatprep.subr.bf16.mxu0 0
    %50 = vmatpush1.bf16.msra.mxu0 0
    %51 = vmatprep.subr.bf16.mxu0 0
    %52 = vmatpush1.bf16.msra.mxu0 0
    %53 = vmatprep.subr.bf16.mxu0 0
    %54 = vmatpush1.bf16.msra.mxu0 0
    %55 = vmatprep.subr.bf16.mxu0 0
    %56 = vmatpush1.bf16.msra.mxu0 0
    %57 = vmatprep.subr.bf16.mxu0 0
    %58 = vmatpush1.bf16.msra.mxu0 0
    %59 = vmatprep.subr.bf16.mxu0 0
    %60 = vmatpush1.bf16.msra.mxu0 0
    %61 = vmatprep.subr.bf16.mxu0 0
    %62 = vmatpush1.bf16.msra.mxu0 0
    %63 = vmatprep.subr.bf16.mxu0 0
    %64 = vmatpush1.bf16.msra.mxu0 0
    %65 = vmatprep.mubr.bf16.mxu0 0
    %66 = vmatmul.mubr.bf16.gmra.mrb[0].mxu0 %v27
    %v67 = vpop.f32.mrb[0].mxu0
    %v68 = vadd.f32 %v23, %v67
    %v69 = vpop.f32.mrb[0].mxu0
    %v70 = vpop.f32.mrb[0].mxu0
    %v71 = vpop.f32.mrb[0].mxu0
    %72 = vdwg.mxu0
    %v73 = vsel %vm25, %v68, -inf
    %74 = vmax.xlane.f32.xlu0 %v73
    %v75 = vpop.xlane.xlu0 %74
    %v76 = vsub.f32 %v68, %v75
    %v77 = vmul.f32 %v76, 1.442695
    %v78 = vpow.pop %v77
    %v79 = vsel %vm25, %v78, 0.0
    %80 = vadd.xlane.f32.xlu0 %v79
    %v81 = vpop.xlane.xlu0 %80
    %v82 = vlog2.pop %v81
    %v83 = vmul.f32 %v82, 0.6931472
    %v84 = vsub.f32 %v76, %v83
    %85 = vst.msk [vmem:[#allocation2] sm:$0xff] %vm25, %v84
    // Predicated region
    $region14: #{gcn_forward.3} parent=1 // pred_check
      _
    $region15: #{gcn_forward.3} parent=1 // pred_check_branch
      %87 = sbr.rel (0) target = $region17
    $region16: #{gcn_forward.3} parent=1 // pred_region
      %s89 = ssub.s32 128, 128
      %90 = vsyncadd [#allocation3], %s89
      %s92 = sshll.u32 [#allocation2], 4
      %s93 = int_to_ptr.vmem [resolvable:$true] %s92
      %95 = dma.vmem_to_hbm [thread:$0]  %s93, 128, %s3, [#allocation3]
    $region17: #{gcn_forward.3} parent=1 // pred_fallthru
      _
    // Predicated region
    $region18: #{gcn_forward.3} parent=1 // pred_check
      _
    $region19: #{gcn_forward.3} parent=1 // pred_check_branch
      %97 = sbr.rel (0) target = $region21
    $region20: #{gcn_forward.3} parent=1 // pred_region
      %98 = dma.done [#allocation3], 128
    $region21: #{gcn_forward.3} parent=1 // pred_fallthru
      _
    %99 = vsyncpa [#allocation3], 1

// kernel: gcn_forward.2
$region0: #{gcn_forward.2}
  #allocation0 [shape = 'u32[]', space=smem, size = 0x4, offset = 0x4, fixed_abs, tag = 'smem constant byte address 0x4 - core index']
  #allocation1 [shape = 'u32[144,128]{1,0:T(1,128)}', space=vmem, size = 0x12000, scoped, tag = 'internal scratch']
  %s0 = inlined_call_operand.vmem [shape: bf16[8,8], index: 0, kind: input, shape index: {}]
  %s1 = inlined_call_operand.vmem [shape: bf16[8,32], index: 1, kind: input, shape index: {}]
  %s2 = inlined_call_operand.vmem [shape: f32[1,32], index: 2, kind: input, shape index: {}]
  %s3 = inlined_call_operand.vmem [shape: f32[8,32], index: 3, kind: output, shape index: {}]
  %s4 = sld [smem:[#allocation0]]
  $region22: #{gcn_forward.2} parent=0
    _
  %s6 = ssub.s32 1, %s4
  %s7 = scalar_select 0, %s6, %s4
  // Predicated region
  $region2: #{gcn_forward.2} parent=0 // pred_check
    _
  $region3: #{gcn_forward.2} parent=0 // pred_check_branch
    %9 = sbr.rel (0) target = $region5
  $region4: #{gcn_forward.2} parent=0 // pred_region
    _
  $region5: #{gcn_forward.2} parent=0 // pred_fallthru
    _
  // Predicated region
  $region6: #{gcn_forward.2} parent=0 // pred_check
    _
  $region7: #{gcn_forward.2} parent=0 // pred_check_branch
    %11 = sbr.rel (0) target = $region9
  $region8: #{gcn_forward.2} parent=0 // pred_region
    _
  $region9: #{gcn_forward.2} parent=0 // pred_fallthru
    _
  // Predicated region
  $region10: #{gcn_forward.2} parent=0 // pred_check
    _
  $region11: #{gcn_forward.2} parent=0 // pred_check_branch
    %13 = sbr.rel (0) target = $region13
  $region12: #{gcn_forward.2} parent=0 // pred_region
    _
  $region13: #{gcn_forward.2} parent=0 // pred_fallthru
    _
  %v15 = vld [vmem:[%s0] sm:$0xf]
  %v16 = vld [vmem:[%s1] sm:$0xf]
  %v17 = vld [vmem:[%s2] sm:$0x1]
  %v19 = vlaneseq
  %v20 = vshrl.u32 %v19, 7
  %v21 = vsub.s32 0, %v20
  %v22 = vrot.slane %v17, %v21
  %vm24 = vcmask 64512
  %v26 = vsel %vm24, %v15, 0
  %vm28 = vcmask 1043456
  %v30 = vsel %vm28, %v16, 0
  %32 = vmatprep.subr.bf16.mxu0 0
  %33 = vmatpush1.bf16.msra.mxu0 %v30
  %34 = vmatprep.subr.bf16.mxu0 0
  %35 = vmatpush1.bf16.msra.mxu0 0
  %36 = vmatprep.subr.bf16.mxu0 0
  %37 = vmatpush1.bf16.msra.mxu0 0
  %38 = vmatprep.subr.bf16.mxu0 0
  %39 = vmatpush1.bf16.msra.mxu0 0
  %40 = vmatprep.subr.bf16.mxu0 0
  %41 = vmatpush1.bf16.msra.mxu0 0
  %42 = vmatprep.subr.bf16.mxu0 0
  %43 = vmatpush1.bf16.msra.mxu0 0
  %44 = vmatprep.subr.bf16.mxu0 0
  %45 = vmatpush1.bf16.msra.mxu0 0
  %46 = vmatprep.subr.bf16.mxu0 0
  %47 = vmatpush1.bf16.msra.mxu0 0
  %48 = vmatprep.subr.bf16.mxu0 0
  %49 = vmatpush1.bf16.msra.mxu0 0
  %50 = vmatprep.subr.bf16.mxu0 0
  %51 = vmatpush1.bf16.msra.mxu0 0
  %52 = vmatprep.subr.bf16.mxu0 0
  %53 = vmatpush1.bf16.msra.mxu0 0
  %54 = vmatprep.subr.bf16.mxu0 0
  %55 = vmatpush1.bf16.msra.mxu0 0
  %56 = vmatprep.subr.bf16.mxu0 0
  %57 = vmatpush1.bf16.msra.mxu0 0
  %58 = vmatprep.subr.bf16.mxu0 0
  %59 = vmatpush1.bf16.msra.mxu0 0
  %60 = vmatprep.subr.bf16.mxu0 0
  %61 = vmatpush1.bf16.msra.mxu0 0
  %62 = vmatprep.subr.bf16.mxu0 0
  %63 = vmatpush1.bf16.msra.mxu0 0
  %64 = vmatprep.mubr.bf16.mxu0 0
  %65 = vmatmul.mubr.bf16.gmra.mrb[0].mxu0 %v26
  %v66 = vpop.f32.mrb[0].mxu0
  %v67 = vadd.f32 %v22, %v66
  %v68 = vpop.f32.mrb[0].mxu0
  %v69 = vpop.f32.mrb[0].mxu0
  %v70 = vpop.f32.mrb[0].mxu0
  %71 = vdwg.mxu0
  %v72 = vmax.f32 %v67, 0.0
  %vm73 = vcmask 261120
  %74 = vst.msk [vmem:[%s3] sm:$0xff] %vm73, %v72
  // Predicated region
  $region14: #{gcn_forward.2} parent=0 // pred_check
    _
  $region15: #{gcn_forward.2} parent=0 // pred_check_branch
    %76 = sbr.rel (0) target = $region17
  $region16: #{gcn_forward.2} parent=0 // pred_region
    _
  $region17: #{gcn_forward.2} parent=0 // pred_fallthru
    _
  // Predicated region
  $region18: #{gcn_forward.2} parent=0 // pred_check
    _
  $region19: #{gcn_forward.2} parent=0 // pred_check_branch
    %78 = sbr.rel (0) target = $region21
  $region20: #{gcn_forward.2} parent=0 // pred_region
    _
  $region21: #{gcn_forward.2} parent=0 // pred_fallthru
    _

</llo_original>
